<compile_context>
chip_gen: v5e
topology: v5e:2x2
jax: 0.10.0
libtpu: 0.0.40
codegen_flags: <defaults>
</compile_context>

<pallas_src>
import functools

import jax
import jax.numpy as jnp
from jax import lax
from jax.experimental import pallas as pl
from jax.experimental.pallas import tpu as pltpu

IN_FEATURES = 2
OUT_FEATURES = 10


def _softmaxnet_kernel(x_ref, w_ref, b_ref, eye_ref, o_ref):
    # x_ref:   [2, TILE_N]   features on sublanes, batch on lanes (lane-dense)
    # w_ref:   [10, 2]       PyTorch Linear weight layout
    # b_ref:   [10, 1]
    # eye_ref: [10, 10]      identity, used for the MXU relayout
    # o_ref:   [TILE_N, 10]  PyTorch output layout (batch-major)
    x = x_ref[...].astype(jnp.float32)
    w = w_ref[...].astype(jnp.float32)
    b = b_ref[...].astype(jnp.float32)

    # Linear(2 -> 10) as two broadcast FMAs on the VPU; at K=2 the MXU would be
    # ~0% utilized for the projection itself, and this keeps the math lane-dense.
    logits = w[:, 0:1] * x[0:1, :] + w[:, 1:2] * x[1:2, :] + b        # [10, TILE_N]

    # Numerically stable log_softmax over the class axis (sublanes here ==
    # PyTorch dim=1).  Cross-sublane max/sum land on the XLU slot.
    m = jnp.max(logits, axis=0, keepdims=True)
    shifted = logits - m
    lse = jnp.log(jnp.sum(jnp.exp(shifted), axis=0, keepdims=True))
    logprobs = shifted - lse                                          # [10, TILE_N]

    # Relayout to the PyTorch [TILE_N, 10] output on the MXU: contracting the
    # class axis of `logprobs` against the 10x10 identity gives
    # out[t, c] = logprobs[c, t] (an exact transpose: x*1 and x*0 are exact).
    o_ref[...] = lax.dot_general(
        logprobs, eye_ref[...],
        dimension_numbers=(((0,), (0,)), ((), ())),
        precision=lax.Precision.HIGHEST,
        preferred_element_type=jnp.float32,
    ).astype(o_ref.dtype)


def _round_up(a, b):
    return ((a + b - 1) // b) * b


@functools.partial(jax.jit, static_argnames=("tile_n", "out_dtype"))
def softmaxnet_forward(x, weight, bias, *, tile_n=16384, out_dtype=jnp.float32):
    """SoftmaxNET forward.  x: [N, 2], weight: [10, 2], bias: [10] -> [N, 10]."""
    n = x.shape[0]

    # ---- tile selection ----------------------------------------------------
    # Batch-major output windows cost 512 B/column/buffer (10 lanes pad to 128),
    # so ~16K columns is the VMEM-appropriate maximum for this layout while
    # still amortizing the ~0.35 us fixed per-grid-step overhead.
    tile_n = max(128, min(_round_up(tile_n, 128), 16384))
    tile_n = min(tile_n, _round_up(n, 128))                    # don't exceed batch
    # Keep >= 2 grid steps when there is enough work so the "parallel" axis can
    # be split across v7x's two TensorCores (neutral on v5e/v6e).
    tile_n = min(tile_n, max(128, _round_up(pl.cdiv(n, 2), 128)))
    grid = pl.cdiv(n, tile_n)

    # ---- scoped-VMEM budget --------------------------------------------------
    # Double-buffered in/out windows + classes-major f32 temporaries + one
    # output-sized staging copy, with ~40% headroom.  Only raise the limit when
    # the default scope (16 MiB on v5e) would actually be too small; stays well
    # under v7x's 64 MiB physical VMEM.
    win_bytes = 2 * (8 * tile_n * 4) + 2 * (128 * tile_n * 4)
    tmp_bytes = 4 * (16 * tile_n * 4) + 128 * tile_n * 4
    est_bytes = win_bytes + tmp_bytes
    vmem_limit = (int(min(48 * 1024 * 1024, est_bytes * 1.4))
                  if est_bytes > 12 * 1024 * 1024 else None)

    # Feature-major, lane-dense input view (fused into this jit -- one pass).
    # TODO(synk): accept a feature-major [2, N] input upstream to drop it.
    xt = x.astype(jnp.float32).T                               # [2, N]
    w = weight.astype(jnp.float32)                             # [10, 2]
    b2d = bias.astype(jnp.float32).reshape(OUT_FEATURES, 1)    # [10, 1]
    eye = jnp.eye(OUT_FEATURES, dtype=jnp.float32)             # [10, 10]

    return pl.pallas_call(
        _softmaxnet_kernel,
        out_shape=jax.ShapeDtypeStruct((n, OUT_FEATURES), out_dtype),
        grid_spec=pltpu.PrefetchScalarGridSpec(
            num_scalar_prefetch=0,
            grid=(grid,),
            in_specs=[
                pl.BlockSpec((IN_FEATURES, tile_n), lambda i: (0, i)),
                # Tiny parameter blocks: VMEM-resident, same block every step.
                pl.BlockSpec((OUT_FEATURES, IN_FEATURES), lambda i: (0, 0)),
                pl.BlockSpec((OUT_FEATURES, 1), lambda i: (0, 0)),
                pl.BlockSpec((OUT_FEATURES, OUT_FEATURES), lambda i: (0, 0)),
            ],
            out_specs=pl.BlockSpec((tile_n, OUT_FEATURES), lambda i: (i, 0)),
        ),
        compiler_params=pltpu.CompilerParams(
            dimension_semantics=("parallel",),
            vmem_limit_bytes=vmem_limit,
        ),
    )(xt, w, b2d, eye)


if __name__ == "__main__":
    key = jax.random.PRNGKey(0)
    kx, kw, kb, kx2 = jax.random.split(key, 4)

    bound = 1.0 / (IN_FEATURES ** 0.5)
    weight = jax.random.uniform(kw, (OUT_FEATURES, IN_FEATURES),
                                minval=-bound, maxval=bound, dtype=jnp.float32)
    bias = jax.random.uniform(kb, (OUT_FEATURES,),
                              minval=-bound, maxval=bound, dtype=jnp.float32)

    # Small batch: single grid step with a partial (8-of-128 column) block.
    batch = 8
    x = jax.random.normal(kx, (batch, IN_FEATURES), dtype=jnp.float32)
    out = jax.block_until_ready(softmaxnet_forward(x, weight, bias))
    ref = jax.nn.log_softmax(x @ weight.T + bias, axis=1)
    assert out.shape == (batch, OUT_FEATURES)
    assert jnp.allclose(out, ref, atol=1e-5, rtol=1e-5)

    # Ragged batch exercising multiple grid steps + a masked boundary block
    # (1000 rows -> 4 steps of 256 columns, last one partial).
    batch2 = 1000
    x2 = jax.random.normal(kx2, (batch2, IN_FEATURES), dtype=jnp.float32)
    out2 = jax.block_until_ready(softmaxnet_forward(x2, weight, bias, tile_n=256))
    ref2 = jax.nn.log_softmax(x2 @ weight.T + bias, axis=1)
    assert out2.shape == (batch2, OUT_FEATURES)
    assert jnp.allclose(out2, ref2, atol=1e-5, rtol=1e-5)

    print("KERNEL_OK")
</pallas_src>

<mosaic_0001>
module attributes {stable_mosaic.version = 11 : i64} {
  func.func @_softmaxnet_kernel(%arg0: i32, %arg1: memref<2x128xf32, #tpu.memory_space<vmem>>, %arg2: memref<10x2xf32, #tpu.memory_space<vmem>>, %arg3: memref<10x1xf32, #tpu.memory_space<vmem>>, %arg4: memref<10x10xf32, #tpu.memory_space<vmem>>, %arg5: memref<128x10xf32, #tpu.memory_space<vmem>>) attributes {dimension_semantics = [#tpu.dimension_semantics<parallel>], iteration_bounds = array<i64: 1>, scalar_prefetch = 0 : i64, scratch_operands = 0 : i64, tpu.core_type = #tpu.core_type<tc>, window_params = [{transform_indices = @transform_0, window_bounds = array<i64: 2, 128>}, {pipeline_mode = #tpu.pipeline_mode<synchronous>, transform_indices = @transform_1, window_bounds = array<i64: 10, 2>}, {pipeline_mode = #tpu.pipeline_mode<synchronous>, transform_indices = @transform_2, window_bounds = array<i64: 10, 1>}, {pipeline_mode = #tpu.pipeline_mode<synchronous>, transform_indices = @transform_3, window_bounds = array<i64: 10, 10>}, {transform_indices = @transform_4, window_bounds = array<i64: 128, 10>}]} {
    %c0 = arith.constant 0 : index
    %c0_0 = arith.constant 0 : index
    %0 = vector.load %arg1[%c0, %c0_0] : memref<2x128xf32, #tpu.memory_space<vmem>>, vector<2x128xf32>
    %c0_1 = arith.constant 0 : index
    %c0_2 = arith.constant 0 : index
    %1 = vector.load %arg2[%c0_1, %c0_2] : memref<10x2xf32, #tpu.memory_space<vmem>>, vector<10x2xf32>
    %c0_3 = arith.constant 0 : index
    %c0_4 = arith.constant 0 : index
    %2 = vector.load %arg3[%c0_3, %c0_4] : memref<10x1xf32, #tpu.memory_space<vmem>>, vector<10x1xf32>
    %3 = vector.extract_strided_slice %1 {offsets = [0, 0], sizes = [10, 1], strides = [1, 1]} : vector<10x2xf32> to vector<10x1xf32>
    %4 = vector.extract_strided_slice %0 {offsets = [0, 0], sizes = [1, 128], strides = [1, 1]} : vector<2x128xf32> to vector<1x128xf32>
    %5 = vector.broadcast %3 : vector<10x1xf32> to vector<10x128xf32>
    %6 = vector.broadcast %4 : vector<1x128xf32> to vector<10x128xf32>
    %7 = arith.mulf %5, %6 : vector<10x128xf32>
    %8 = vector.extract_strided_slice %1 {offsets = [0, 1], sizes = [10, 1], strides = [1, 1]} : vector<10x2xf32> to vector<10x1xf32>
    %9 = vector.extract_strided_slice %0 {offsets = [1, 0], sizes = [1, 128], strides = [1, 1]} : vector<2x128xf32> to vector<1x128xf32>
    %10 = vector.broadcast %8 : vector<10x1xf32> to vector<10x128xf32>
    %11 = vector.broadcast %9 : vector<1x128xf32> to vector<10x128xf32>
    %12 = arith.mulf %10, %11 : vector<10x128xf32>
    %13 = arith.addf %7, %12 : vector<10x128xf32>
    %14 = vector.broadcast %2 : vector<10x1xf32> to vector<10x128xf32>
    %15 = arith.addf %13, %14 : vector<10x128xf32>
    %cst = arith.constant dense<0xFF800000> : vector<128xf32>
    %16 = vector.multi_reduction <maximumf>, %15, %cst [0] : vector<10x128xf32> to vector<128xf32>
    %17 = vector.shape_cast %16 : vector<128xf32> to vector<1x128xf32>
    %18 = vector.broadcast %17 : vector<1x128xf32> to vector<10x128xf32>
    %19 = arith.subf %15, %18 : vector<10x128xf32>
    %20 = math.exp %19 : vector<10x128xf32>
    %cst_5 = arith.constant dense<0.000000e+00> : vector<128xf32>
    %21 = vector.multi_reduction <add>, %20, %cst_5 [0] : vector<10x128xf32> to vector<128xf32>
    %22 = vector.shape_cast %21 : vector<128xf32> to vector<1x128xf32>
    %23 = math.log %22 : vector<1x128xf32>
    %24 = vector.broadcast %23 : vector<1x128xf32> to vector<10x128xf32>
    %25 = arith.subf %19, %24 : vector<10x128xf32>
    %c0_6 = arith.constant 0 : index
    %c0_7 = arith.constant 0 : index
    %26 = vector.load %arg4[%c0_6, %c0_7] : memref<10x10xf32, #tpu.memory_space<vmem>>, vector<10x10xf32>
    %cst_8 = arith.constant dense<0.000000e+00> : vector<128x10xf32>
    %27 = tpu.matmul %25, %26, %cst_8 {dimension_numbers = #tpu.dot_dimension_numbers<[0], [0], [1], [1], [0, 1, 1, 1], [], []>, precision = #tpu.contract_precision<fp32>} : vector<10x128xf32>, vector<10x10xf32>, vector<128x10xf32> -> vector<128x10xf32>
    %c0_9 = arith.constant 0 : index
    %c0_10 = arith.constant 0 : index
    %28 = vector.load %arg5[%c0_9, %c0_10] : memref<128x10xf32, #tpu.memory_space<vmem>>, vector<128x10xf32>
    tpu.vector_store %arg5[%c0_9, %c0_10], %27 {strides = array<i32>} : memref<128x10xf32, #tpu.memory_space<vmem>>, vector<128x10xf32>,
    return
  }
  func.func @transform_0(%arg0: i32) -> (i32, i32) {
    %c0_i32 = arith.constant 0 : i32
    %c0_i32_0 = arith.constant 0 : i32
    return %c0_i32, %arg0 : i32, i32
  }
  func.func @transform_1(%arg0: i32) -> (i32, i32) {
    %c0_i32 = arith.constant 0 : i32
    %c0_i32_0 = arith.constant 0 : i32
    %c0_i32_1 = arith.constant 0 : i32
    return %c0_i32, %c0_i32_0 : i32, i32
  }
  func.func @transform_2(%arg0: i32) -> (i32, i32) {
    %c0_i32 = arith.constant 0 : i32
    %c0_i32_0 = arith.constant 0 : i32
    %c0_i32_1 = arith.constant 0 : i32
    return %c0_i32, %c0_i32_0 : i32, i32
  }
  func.func @transform_3(%arg0: i32) -> (i32, i32) {
    %c0_i32 = arith.constant 0 : i32
    %c0_i32_0 = arith.constant 0 : i32
    %c0_i32_1 = arith.constant 0 : i32
    return %c0_i32, %c0_i32_0 : i32, i32
  }
  func.func @transform_4(%arg0: i32) -> (i32, i32) {
    %c0_i32 = arith.constant 0 : i32
    %c0_i32_0 = arith.constant 0 : i32
    return %arg0, %c0_i32 : i32, i32
  }
}

</mosaic_0001>

<llo_original>
// kernel: softmaxnet_forward.1
$region0: #{softmaxnet_forward.1}
  #allocation0 [shape = 'u32[]', space=smem, size = 0x4, offset = 0x4, fixed_abs, tag = 'smem constant byte address 0x4 - core index']
  #allocation1 [shape = 'u32[72,128]{1,0:T(1,128)}', space=vmem, size = 0x9000, scoped, tag = 'internal scratch']
  %s0 = inlined_call_operand.vmem [shape: f32[2,8], index: 0, kind: input, shape index: {}]
  %s1 = inlined_call_operand.vmem [shape: f32[10,2], index: 1, kind: input, shape index: {}]
  %s2 = inlined_call_operand.vmem [shape: f32[10,1], index: 2, kind: input, shape index: {}]
  %s3 = inlined_call_operand.vmem [shape: f32[10,10], index: 3, kind: input, shape index: {}]
  %s4 = inlined_call_operand.hbm [shape: f32[8,10], index: 4, kind: output, shape index: {}]
  %s5 = sld [smem:[#allocation0]]
  $region26: #{softmaxnet_forward.1} parent=0
    _
  %s7 = ssub.s32 1, %s5
  %s8 = scalar_select 0, %s7, %s5
  $region1: #{softmaxnet_forward.1} parent=0
    #allocation2 [shape = 'u8[65536]{0}', space=vmem, size = 0x10000, scoped, tag = 'output window, operand 0, single buffered']
    #allocation3 [shape = 's32[1]{0}', space=sflag, size = 0x4, scoped, tag = 'scoped memory for softmaxnet_forward.1']
    %9 = vsyncpa [#allocation3], 0
    // Predicated region
    $region2: #{softmaxnet_forward.1} parent=1 // pred_check
      _
    $region3: #{softmaxnet_forward.1} parent=1 // pred_check_branch
      %11 = sbr.rel (0) target = $region5
    $region4: #{softmaxnet_forward.1} parent=1 // pred_region
      _
    $region5: #{softmaxnet_forward.1} parent=1 // pred_fallthru
      _
    // Predicated region
    $region6: #{softmaxnet_forward.1} parent=1 // pred_check
      _
    $region7: #{softmaxnet_forward.1} parent=1 // pred_check_branch
      %13 = sbr.rel (0) target = $region9
    $region8: #{softmaxnet_forward.1} parent=1 // pred_region
      _
    $region9: #{softmaxnet_forward.1} parent=1 // pred_fallthru
      _
    // Predicated region
    $region10: #{softmaxnet_forward.1} parent=1 // pred_check
      _
    $region11: #{softmaxnet_forward.1} parent=1 // pred_check_branch
      %15 = sbr.rel (0) target = $region13
    $region12: #{softmaxnet_forward.1} parent=1 // pred_region
      _
    $region13: #{softmaxnet_forward.1} parent=1 // pred_fallthru
      _
    // Predicated region
    $region14: #{softmaxnet_forward.1} parent=1 // pred_check
      _
    $region15: #{softmaxnet_forward.1} parent=1 // pred_check_branch
      %17 = sbr.rel (0) target = $region17
    $region16: #{softmaxnet_forward.1} parent=1 // pred_region
      _
    $region17: #{softmaxnet_forward.1} parent=1 // pred_fallthru
      _
    %v18 = vld [vmem:[%s0] sm:$0x3]
    %v19 = vld [vmem:[%s1] sm:$0xff]
    %v20 = vld [vmem:[%s1 + $0x8] sm:$0x3]
    %v21 = vld [vmem:[%s2] sm:$0xff]
    %v22 = vld [vmem:[%s2 + $0x8] sm:$0x3]
    %24 = vset.pattern.permute.xlu0 0
    %25 = vperm.xlu0 %24, %v19
    %v26 = vpop.permute.xlu0 %25
    %29 = vset.pattern.permute.xlu0 0
    %30 = vperm.xlu0 %29, %v20
    %v31 = vpop.permute.xlu0 %30
    %v33 = vperm.slane %v18, 0
    %v34 = vmul.f32 %v26, %v33
    %v35 = vmul.f32 %v31, %v33
    %36 = vset.pattern.permute.xlu0 1
    %37 = vperm.xlu0 %36, %v19
    %v38 = vpop.permute.xlu0 %37
    %40 = vset.pattern.permute.xlu0 1
    %41 = vperm.xlu0 %40, %v20
    %v42 = vpop.permute.xlu0 %41
    %v44 = vperm.slane %v18, 1
    %v45 = vmul.f32 %v38, %v44
    %v46 = vmul.f32 %v42, %v44
    %v47 = vadd.f32 %v34, %v45
    %v48 = vadd.f32 %v35, %v46
    %50 = vset.pattern.permute.xlu0 0
    %51 = vperm.xlu0 %50, %v21
    %v52 = vpop.permute.xlu0 %51
    %55 = vset.pattern.permute.xlu0 0
    %56 = vperm.xlu0 %55, %v22
    %v57 = vpop.permute.xlu0 %56
    %v59 = vadd.f32 %v47, %v52
    %v60 = vadd.f32 %v48, %v57
    %vm61 = vcmask 1041408
    %v62 = vsel %vm61, %v60, -inf
    %v63 = vmax.f32 %v59, %v62
    %v64 = vrot.slane %v63, 4
    %v65 = vmax.f32 %v63, %v64
    %v66 = vrot.slane %v65, 2
    %v67 = vmax.f32 %v65, %v66
    %v68 = vrot.slane %v67, 1
    %v69 = vmax.f32 %v67, %v68
    %v70 = vsub.f32 %v59, %v69
    %v71 = vsub.f32 %v60, %v69
    %v72 = vmul.f32 %v70, 1.442695
    %v73 = vpow.pop %v72
    %v74 = vmul.f32 %v71, 1.442695
    %v75 = vpow.pop %v74
    %v76 = vsel %vm61, %v75, 0.0
    %v77 = vadd.f32 %v73, %v76
    %v78 = vrot.slane %v77, 4
    %v79 = vadd.f32 %v77, %v78
    %v80 = vrot.slane %v79, 2
    %v81 = vadd.f32 %v79, %v80
    %v82 = vrot.slane %v81, 1
    %v83 = vadd.f32 %v81, %v82
    %v84 = vlog2.pop %v83
    %v85 = vmul.f32 %v84, 0.6931472
    %v86 = vsub.f32 %v70, %v85
    %v87 = vsub.f32 %v71, %v85
    %v88 = vld [vmem:[%s3] sm:$0xff]
    %v89 = vld [vmem:[%s3 + $0x8] sm:$0x3]
    %90 = vxpose.xlu0.b32.start [1/16] %v86, 128
    %91 = vxpose.xlu0.b32.cont [2/16] %v87, 128
    %92 = vxpose.xlu0.b32.cont [3/16] 0.0, 128
    %93 = vxpose.xlu0.b32.cont [4/16] 0.0, 128
    %94 = vxpose.xlu0.b32.cont [5/16] 0.0, 128
    %95 = vxpose.xlu0.b32.cont [6/16] 0.0, 128
    %96 = vxpose.xlu0.b32.cont [7/16] 0.0, 128
    %97 = vxpose.xlu0.b32.cont [8/16] 0.0, 128
    %98 = vxpose.xlu0.b32.cont [9/16] 0.0, 128
    %99 = vxpose.xlu0.b32.cont [10/16] 0.0, 128
    %100 = vxpose.xlu0.b32.cont [11/16] 0.0, 128
    %101 = vxpose.xlu0.b32.cont [12/16] 0.0, 128
    %102 = vxpose.xlu0.b32.cont [13/16] 0.0, 128
    %103 = vxpose.xlu0.b32.cont [14/16] 0.0, 128
    %104 = vxpose.xlu0.b32.cont [15/16] 0.0, 128
    %105 = vxpose.xlu0.b32.end [16/16] 0.0, 128
    %v106 = vpop.trf.xlu0
    %v107 = vpop.trf.xlu0
    %v108 = vpop.trf.xlu0
    %v109 = vpop.trf.xlu0
    %v110 = vpop.trf.xlu0
    %v111 = vpop.trf.xlu0
    %v112 = vpop.trf.xlu0
    %v113 = vpop.trf.xlu0
    %v114 = vpop.trf.xlu0
    %v115 = vpop.trf.xlu0
    %v116 = vpop.trf.xlu0
    %v117 = vpop.trf.xlu0
    %v118 = vpop.trf.xlu0
    %v119 = vpop.trf.xlu0
    %v120 = vpop.trf.xlu0
    %v121 = vpop.trf.xlu0
    %vm122 = vcmask 80896
    %v124 = vsel %vm122, %v106, 0
    %v127 = vsel %vm122, %v107, 0
    %v130 = vsel %vm122, %v108, 0
    %v133 = vsel %vm122, %v109, 0
    %v136 = vsel %vm122, %v110, 0
    %v139 = vsel %vm122, %v111, 0
    %v142 = vsel %vm122, %v112, 0
    %v145 = vsel %vm122, %v113, 0
    %v148 = vsel %vm122, %v114, 0
    %v151 = vsel %vm122, %v115, 0
    %v154 = vsel %vm122, %v116, 0
    %v157 = vsel %vm122, %v117, 0
    %v160 = vsel %vm122, %v118, 0
    %v163 = vsel %vm122, %v119, 0
    %v166 = vsel %vm122, %v120, 0
    %v169 = vsel %vm122, %v121, 0
    %v172 = vsel %vm61, %v89, 0
    %174 = vmatpush.msra.mxu0 0.0
    %175 = vmatpush.msra.mxu0 0.0
    %176 = vmatpush.msra.mxu0 0.0
    %177 = vmatpush.msra.mxu0 0.0
    %178 = vmatpush.msra.mxu0 0.0
    %179 = vmatpush.msra.mxu0 0.0
    %180 = vmatpush.msra.mxu0 0.0
    %181 = vmatpush.msra.mxu0 0.0
    %182 = vmatpush.msra.mxu0 0.0
    %183 = vmatpush.msra.mxu0 0.0
    %184 = vmatpush.msra.mxu0 0.0
    %185 = vmatpush.msra.mxu0 0.0
    %186 = vmatpush.msra.mxu0 0.0
    %187 = vmatpush.msra.mxu0 0.0
    %v188 = vand.u32 %v172, 4294901760
    %189 = vmatpush.msra.mxu0 %v188
    %v190 = vand.u32 %v88, 4294901760
    %191 = vmatpush.msra.mxu0 %v190
    %v192 = vand.u32 %v124, 4294901760
    %v193 = vsub.f32 %v124, %v192
    %v194 = vand.u32 %v193, 4294901760
    %v195 = vsub.f32 %v193, %v194
    %v196 = vand.u32 %v195, 4294901760
    %197 = vmatmul.f32.gmra.mxu0 %v196
    %v198 = vpop.f32.mrf.mxu0
    %v199 = vadd.f32 0.0, %v198
    %v200 = vand.u32 %v127, 4294901760
    %v201 = vsub.f32 %v127, %v200
    %v202 = vand.u32 %v201, 4294901760
    %v203 = vsub.f32 %v201, %v202
    %v204 = vand.u32 %v203, 4294901760
    %205 = vmatmul.f32.gmra.mxu0 %v204
    %v206 = vpop.f32.mrf.mxu0
    %v207 = vadd.f32 0.0, %v206
    %v208 = vand.u32 %v130, 4294901760
    %v209 = vsub.f32 %v130, %v208
    %v210 = vand.u32 %v209, 4294901760
    %v211 = vsub.f32 %v209, %v210
    %v212 = vand.u32 %v211, 4294901760
    %213 = vmatmul.f32.gmra.mxu0 %v212
    %v214 = vpop.f32.mrf.mxu0
    %v215 = vadd.f32 0.0, %v214
    %v216 = vand.u32 %v133, 4294901760
    %v217 = vsub.f32 %v133, %v216
    %v218 = vand.u32 %v217, 4294901760
    %v219 = vsub.f32 %v217, %v218
    %v220 = vand.u32 %v219, 4294901760
    %221 = vmatmul.f32.gmra.mxu0 %v220
    %v222 = vpop.f32.mrf.mxu0
    %v223 = vadd.f32 0.0, %v222
    %v224 = vand.u32 %v136, 4294901760
    %v225 = vsub.f32 %v136, %v224
    %v226 = vand.u32 %v225, 4294901760
    %v227 = vsub.f32 %v225, %v226
    %v228 = vand.u32 %v227, 4294901760
    %229 = vmatmul.f32.gmra.mxu0 %v228
    %v230 = vpop.f32.mrf.mxu0
    %v231 = vadd.f32 0.0, %v230
    %v232 = vand.u32 %v139, 4294901760
    %v233 = vsub.f32 %v139, %v232
    %v234 = vand.u32 %v233, 4294901760
    %v235 = vsub.f32 %v233, %v234
    %v236 = vand.u32 %v235, 4294901760
    %237 = vmatmul.f32.gmra.mxu0 %v236
    %v238 = vpop.f32.mrf.mxu0
    %v239 = vadd.f32 0.0, %v238
    %v240 = vand.u32 %v142, 4294901760
    %v241 = vsub.f32 %v142, %v240
    %v242 = vand.u32 %v241, 4294901760
    %v243 = vsub.f32 %v241, %v242
    %v244 = vand.u32 %v243, 4294901760
    %245 = vmatmul.f32.gmra.mxu0 %v244
    %v246 = vpop.f32.mrf.mxu0
    %v247 = vadd.f32 0.0, %v246
    %v248 = vand.u32 %v145, 4294901760
    %v249 = vsub.f32 %v145, %v248
    %v250 = vand.u32 %v249, 4294901760
    %v251 = vsub.f32 %v249, %v250
    %v252 = vand.u32 %v251, 4294901760
    %253 = vmatmul.f32.gmra.mxu0 %v252
    %v254 = vpop.f32.mrf.mxu0
    %v255 = vadd.f32 0.0, %v254
    %v256 = vand.u32 %v148, 4294901760
    %v257 = vsub.f32 %v148, %v256
    %v258 = vand.u32 %v257, 4294901760
    %v259 = vsub.f32 %v257, %v258
    %v260 = vand.u32 %v259, 4294901760
    %261 = vmatmul.f32.gmra.mxu0 %v260
    %v262 = vpop.f32.mrf.mxu0
    %v263 = vadd.f32 0.0, %v262
    %v264 = vand.u32 %v151, 4294901760
    %v265 = vsub.f32 %v151, %v264
    %v266 = vand.u32 %v265, 4294901760
    %v267 = vsub.f32 %v265, %v266
    %v268 = vand.u32 %v267, 4294901760
    %269 = vmatmul.f32.gmra.mxu0 %v268
    %v270 = vpop.f32.mrf.mxu0
    %v271 = vadd.f32 0.0, %v270
    %v272 = vand.u32 %v154, 4294901760
    %v273 = vsub.f32 %v154, %v272
    %v274 = vand.u32 %v273, 4294901760
    %v275 = vsub.f32 %v273, %v274
    %v276 = vand.u32 %v275, 4294901760
    %277 = vmatmul.f32.gmra.mxu0 %v276
    %v278 = vpop.f32.mrf.mxu0
    %v279 = vadd.f32 0.0, %v278
    %v280 = vand.u32 %v157, 4294901760
    %v281 = vsub.f32 %v157, %v280
    %v282 = vand.u32 %v281, 4294901760
    %v283 = vsub.f32 %v281, %v282
    %v284 = vand.u32 %v283, 4294901760
    %285 = vmatmul.f32.gmra.mxu0 %v284
    %v286 = vpop.f32.mrf.mxu0
    %v287 = vadd.f32 0.0, %v286
    %v288 = vand.u32 %v160, 4294901760
    %v289 = vsub.f32 %v160, %v288
    %v290 = vand.u32 %v289, 4294901760
    %v291 = vsub.f32 %v289, %v290
    %v292 = vand.u32 %v291, 4294901760
    %293 = vmatmul.f32.gmra.mxu0 %v292
    %v294 = vpop.f32.mrf.mxu0
    %v295 = vadd.f32 0.0, %v294
    %v296 = vand.u32 %v163, 4294901760
    %v297 = vsub.f32 %v163, %v296
    %v298 = vand.u32 %v297, 4294901760
    %v299 = vsub.f32 %v297, %v298
    %v300 = vand.u32 %v299, 4294901760
    %301 = vmatmul.f32.gmra.mxu0 %v300
    %v302 = vpop.f32.mrf.mxu0
    %v303 = vadd.f32 0.0, %v302
    %v304 = vand.u32 %v166, 4294901760
    %v305 = vsub.f32 %v166, %v304
    %v306 = vand.u32 %v305, 4294901760
    %v307 = vsub.f32 %v305, %v306
    %v308 = vand.u32 %v307, 4294901760
    %309 = vmatmul.f32.gmra.mxu0 %v308
    %v310 = vpop.f32.mrf.mxu0
    %v311 = vadd.f32 0.0, %v310
    %v312 = vand.u32 %v169, 4294901760
    %v313 = vsub.f32 %v169, %v312
    %v314 = vand.u32 %v313, 4294901760
    %v315 = vsub.f32 %v313, %v314
    %v316 = vand.u32 %v315, 4294901760
    %317 = vmatmul.f32.gmra.mxu0 %v316
    %v318 = vpop.f32.mrf.mxu0
    %v319 = vadd.f32 0.0, %v318
    %320 = vdwg.mxu0
    %321 = vmatpush.msra.mxu0 0.0
    %322 = vmatpush.msra.mxu0 0.0
    %323 = vmatpush.msra.mxu0 0.0
    %324 = vmatpush.msra.mxu0 0.0
    %325 = vmatpush.msra.mxu0 0.0
    %326 = vmatpush.msra.mxu0 0.0
    %327 = vmatpush.msra.mxu0 0.0
    %328 = vmatpush.msra.mxu0 0.0
    %329 = vmatpush.msra.mxu0 0.0
    %330 = vmatpush.msra.mxu0 0.0
    %331 = vmatpush.msra.mxu0 0.0
    %332 = vmatpush.msra.mxu0 0.0
    %333 = vmatpush.msra.mxu0 0.0
    %334 = vmatpush.msra.mxu0 0.0
    %v335 = vand.u32 %v172, 4294901760
    %v336 = vsub.f32 %v172, %v335
    %v337 = vand.u32 %v336, 4294901760
    %v338 = vsub.f32 %v336, %v337
    %v339 = vand.u32 %v338, 4294901760
    %340 = vmatpush.msra.mxu0 %v339
    %v341 = vand.u32 %v88, 4294901760
    %v342 = vsub.f32 %v88, %v341
    %v343 = vand.u32 %v342, 4294901760
    %v344 = vsub.f32 %v342, %v343
    %v345 = vand.u32 %v344, 4294901760
    %346 = vmatpush.msra.mxu0 %v345
    %v347 = vand.u32 %v124, 4294901760
    %348 = vmatmul.f32.gmra.mxu0 %v347
    %v349 = vpop.f32.mrf.mxu0
    %v350 = vadd.f32 %v199, %v349
    %v351 = vand.u32 %v127, 4294901760
    %352 = vmatmul.f32.gmra.mxu0 %v351
    %v353 = vpop.f32.mrf.mxu0
    %v354 = vadd.f32 %v207, %v353
    %v355 = vand.u32 %v130, 4294901760
    %356 = vmatmul.f32.gmra.mxu0 %v355
    %v357 = vpop.f32.mrf.mxu0
    %v358 = vadd.f32 %v215, %v357
    %v359 = vand.u32 %v133, 4294901760
    %360 = vmatmul.f32.gmra.mxu0 %v359
    %v361 = vpop.f32.mrf.mxu0
    %v362 = vadd.f32 %v223, %v361
    %v363 = vand.u32 %v136, 4294901760
    %364 = vmatmul.f32.gmra.mxu0 %v363
    %v365 = vpop.f32.mrf.mxu0
    %v366 = vadd.f32 %v231, %v365
    %v367 = vand.u32 %v139, 4294901760
    %368 = vmatmul.f32.gmra.mxu0 %v367
    %v369 = vpop.f32.mrf.mxu0
    %v370 = vadd.f32 %v239, %v369
    %v371 = vand.u32 %v142, 4294901760
    %372 = vmatmul.f32.gmra.mxu0 %v371
    %v373 = vpop.f32.mrf.mxu0
    %v374 = vadd.f32 %v247, %v373
    %v375 = vand.u32 %v145, 4294901760
    %376 = vmatmul.f32.gmra.mxu0 %v375
    %v377 = vpop.f32.mrf.mxu0
    %v378 = vadd.f32 %v255, %v377
    %v379 = vand.u32 %v148, 4294901760
    %380 = vmatmul.f32.gmra.mxu0 %v379
    %v381 = vpop.f32.mrf.mxu0
    %v382 = vadd.f32 %v263, %v381
    %v383 = vand.u32 %v151, 4294901760
    %384 = vmatmul.f32.gmra.mxu0 %v383
    %v385 = vpop.f32.mrf.mxu0
    %v386 = vadd.f32 %v271, %v385
    %v387 = vand.u32 %v154, 4294901760
    %388 = vmatmul.f32.gmra.mxu0 %v387
    %v389 = vpop.f32.mrf.mxu0
    %v390 = vadd.f32 %v279, %v389
    %v391 = vand.u32 %v157, 4294901760
    %392 = vmatmul.f32.gmra.mxu0 %v391
    %v393 = vpop.f32.mrf.mxu0
    %v394 = vadd.f32 %v287, %v393
    %v395 = vand.u32 %v160, 4294901760
    %396 = vmatmul.f32.gmra.mxu0 %v395
    %v397 = vpop.f32.mrf.mxu0
    %v398 = vadd.f32 %v295, %v397
    %v399 = vand.u32 %v163, 4294901760
    %400 = vmatmul.f32.gmra.mxu0 %v399
    %v401 = vpop.f32.mrf.mxu0
    %v402 = vadd.f32 %v303, %v401
    %v403 = vand.u32 %v166, 4294901760
    %404 = vmatmul.f32.gmra.mxu0 %v403
    %v405 = vpop.f32.mrf.mxu0
    %v406 = vadd.f32 %v311, %v405
    %v407 = vand.u32 %v169, 4294901760
    %408 = vmatmul.f32.gmra.mxu0 %v407
    %v409 = vpop.f32.mrf.mxu0
    %v410 = vadd.f32 %v319, %v409
    %411 = vdwg.mxu0
    %412 = vmatpush.msra.mxu0 0.0
    %413 = vmatpush.msra.mxu0 0.0
    %414 = vmatpush.msra.mxu0 0.0
    %415 = vmatpush.msra.mxu0 0.0
    %416 = vmatpush.msra.mxu0 0.0
    %417 = vmatpush.msra.mxu0 0.0
    %418 = vmatpush.msra.mxu0 0.0
    %419 = vmatpush.msra.mxu0 0.0
    %420 = vmatpush.msra.mxu0 0.0
    %421 = vmatpush.msra.mxu0 0.0
    %422 = vmatpush.msra.mxu0 0.0
    %423 = vmatpush.msra.mxu0 0.0
    %424 = vmatpush.msra.mxu0 0.0
    %425 = vmatpush.msra.mxu0 0.0
    %v426 = vand.u32 %v172, 4294901760
    %v427 = vsub.f32 %v172, %v426
    %428 = vmatpush.msra.mxu0 %v427
    %v429 = vand.u32 %v88, 4294901760
    %v430 = vsub.f32 %v88, %v429
    %431 = vmatpush.msra.mxu0 %v430
    %v432 = vand.u32 %v124, 4294901760
    %v433 = vsub.f32 %v124, %v432
    %434 = vmatmul.f32.gmra.mxu0 %v433
    %v435 = vpop.f32.mrf.mxu0
    %v436 = vadd.f32 %v350, %v435
    %v437 = vand.u32 %v127, 4294901760
    %v438 = vsub.f32 %v127, %v437
    %439 = vmatmul.f32.gmra.mxu0 %v438
    %v440 = vpop.f32.mrf.mxu0
    %v441 = vadd.f32 %v354, %v440
    %v442 = vand.u32 %v130, 4294901760
    %v443 = vsub.f32 %v130, %v442
    %444 = vmatmul.f32.gmra.mxu0 %v443
    %v445 = vpop.f32.mrf.mxu0
    %v446 = vadd.f32 %v358, %v445
    %v447 = vand.u32 %v133, 4294901760
    %v448 = vsub.f32 %v133, %v447
    %449 = vmatmul.f32.gmra.mxu0 %v448
    %v450 = vpop.f32.mrf.mxu0
    %v451 = vadd.f32 %v362, %v450
    %v452 = vand.u32 %v136, 4294901760
    %v453 = vsub.f32 %v136, %v452
    %454 = vmatmul.f32.gmra.mxu0 %v453
    %v455 = vpop.f32.mrf.mxu0
    %v456 = vadd.f32 %v366, %v455
    %v457 = vand.u32 %v139, 4294901760
    %v458 = vsub.f32 %v139, %v457
    %459 = vmatmul.f32.gmra.mxu0 %v458
    %v460 = vpop.f32.mrf.mxu0
    %v461 = vadd.f32 %v370, %v460
    %v462 = vand.u32 %v142, 4294901760
    %v463 = vsub.f32 %v142, %v462
    %464 = vmatmul.f32.gmra.mxu0 %v463
    %v465 = vpop.f32.mrf.mxu0
    %v466 = vadd.f32 %v374, %v465
    %v467 = vand.u32 %v145, 4294901760
    %v468 = vsub.f32 %v145, %v467
    %469 = vmatmul.f32.gmra.mxu0 %v468
    %v470 = vpop.f32.mrf.mxu0
    %v471 = vadd.f32 %v378, %v470
    %v472 = vand.u32 %v148, 4294901760
    %v473 = vsub.f32 %v148, %v472
    %474 = vmatmul.f32.gmra.mxu0 %v473
    %v475 = vpop.f32.mrf.mxu0
    %v476 = vadd.f32 %v382, %v475
    %v477 = vand.u32 %v151, 4294901760
    %v478 = vsub.f32 %v151, %v477
    %479 = vmatmul.f32.gmra.mxu0 %v478
    %v480 = vpop.f32.mrf.mxu0
    %v481 = vadd.f32 %v386, %v480
    %v482 = vand.u32 %v154, 4294901760
    %v483 = vsub.f32 %v154, %v482
    %484 = vmatmul.f32.gmra.mxu0 %v483
    %v485 = vpop.f32.mrf.mxu0
    %v486 = vadd.f32 %v390, %v485
    %v487 = vand.u32 %v157, 4294901760
    %v488 = vsub.f32 %v157, %v487
    %489 = vmatmul.f32.gmra.mxu0 %v488
    %v490 = vpop.f32.mrf.mxu0
    %v491 = vadd.f32 %v394, %v490
    %v492 = vand.u32 %v160, 4294901760
    %v493 = vsub.f32 %v160, %v492
    %494 = vmatmul.f32.gmra.mxu0 %v493
    %v495 = vpop.f32.mrf.mxu0
    %v496 = vadd.f32 %v398, %v495
    %v497 = vand.u32 %v163, 4294901760
    %v498 = vsub.f32 %v163, %v497
    %499 = vmatmul.f32.gmra.mxu0 %v498
    %v500 = vpop.f32.mrf.mxu0
    %v501 = vadd.f32 %v402, %v500
    %v502 = vand.u32 %v166, 4294901760
    %v503 = vsub.f32 %v166, %v502
    %504 = vmatmul.f32.gmra.mxu0 %v503
    %v505 = vpop.f32.mrf.mxu0
    %v506 = vadd.f32 %v406, %v505
    %v507 = vand.u32 %v169, 4294901760
    %v508 = vsub.f32 %v169, %v507
    %509 = vmatmul.f32.gmra.mxu0 %v508
    %v510 = vpop.f32.mrf.mxu0
    %v511 = vadd.f32 %v410, %v510
    %512 = vdwg.mxu0
    %513 = vmatpush.msra.mxu0 0.0
    %514 = vmatpush.msra.mxu0 0.0
    %515 = vmatpush.msra.mxu0 0.0
    %516 = vmatpush.msra.mxu0 0.0
    %517 = vmatpush.msra.mxu0 0.0
    %518 = vmatpush.msra.mxu0 0.0
    %519 = vmatpush.msra.mxu0 0.0
    %520 = vmatpush.msra.mxu0 0.0
    %521 = vmatpush.msra.mxu0 0.0
    %522 = vmatpush.msra.mxu0 0.0
    %523 = vmatpush.msra.mxu0 0.0
    %524 = vmatpush.msra.mxu0 0.0
    %525 = vmatpush.msra.mxu0 0.0
    %526 = vmatpush.msra.mxu0 0.0
    %v527 = vand.u32 %v172, 4294901760
    %528 = vmatpush.msra.mxu0 %v527
    %v529 = vand.u32 %v88, 4294901760
    %530 = vmatpush.msra.mxu0 %v529
    %v531 = vand.u32 %v124, 4294901760
    %v532 = vsub.f32 %v124, %v531
    %v533 = vand.u32 %v532, 4294901760
    %534 = vmatmul.f32.gmra.mxu0 %v533
    %v535 = vpop.f32.mrf.mxu0
    %v536 = vadd.f32 %v436, %v535
    %v537 = vand.u32 %v127, 4294901760
    %v538 = vsub.f32 %v127, %v537
    %v539 = vand.u32 %v538, 4294901760
    %540 = vmatmul.f32.gmra.mxu0 %v539
    %v541 = vpop.f32.mrf.mxu0
    %v542 = vadd.f32 %v441, %v541
    %v543 = vand.u32 %v130, 4294901760
    %v544 = vsub.f32 %v130, %v543
    %v545 = vand.u32 %v544, 4294901760
    %546 = vmatmul.f32.gmra.mxu0 %v545
    %v547 = vpop.f32.mrf.mxu0
    %v548 = vadd.f32 %v446, %v547
    %v549 = vand.u32 %v133, 4294901760
    %v550 = vsub.f32 %v133, %v549
    %v551 = vand.u32 %v550, 4294901760
    %552 = vmatmul.f32.gmra.mxu0 %v551
    %v553 = vpop.f32.mrf.mxu0
    %v554 = vadd.f32 %v451, %v553
    %v555 = vand.u32 %v136, 4294901760
    %v556 = vsub.f32 %v136, %v555
    %v557 = vand.u32 %v556, 4294901760
    %558 = vmatmul.f32.gmra.mxu0 %v557
    %v559 = vpop.f32.mrf.mxu0
    %v560 = vadd.f32 %v456, %v559
    %v561 = vand.u32 %v139, 4294901760
    %v562 = vsub.f32 %v139, %v561
    %v563 = vand.u32 %v562, 4294901760
    %564 = vmatmul.f32.gmra.mxu0 %v563
    %v565 = vpop.f32.mrf.mxu0
    %v566 = vadd.f32 %v461, %v565
    %v567 = vand.u32 %v142, 4294901760
    %v568 = vsub.f32 %v142, %v567
    %v569 = vand.u32 %v568, 4294901760
    %570 = vmatmul.f32.gmra.mxu0 %v569
    %v571 = vpop.f32.mrf.mxu0
    %v572 = vadd.f32 %v466, %v571
    %v573 = vand.u32 %v145, 4294901760
    %v574 = vsub.f32 %v145, %v573
    %v575 = vand.u32 %v574, 4294901760
    %576 = vmatmul.f32.gmra.mxu0 %v575
    %v577 = vpop.f32.mrf.mxu0
    %v578 = vadd.f32 %v471, %v577
    %v579 = vand.u32 %v148, 4294901760
    %v580 = vsub.f32 %v148, %v579
    %v581 = vand.u32 %v580, 4294901760
    %582 = vmatmul.f32.gmra.mxu0 %v581
    %v583 = vpop.f32.mrf.mxu0
    %v584 = vadd.f32 %v476, %v583
    %v585 = vand.u32 %v151, 4294901760
    %v586 = vsub.f32 %v151, %v585
    %v587 = vand.u32 %v586, 4294901760
    %588 = vmatmul.f32.gmra.mxu0 %v587
    %v589 = vpop.f32.mrf.mxu0
    %v590 = vadd.f32 %v481, %v589
    %v591 = vand.u32 %v154, 4294901760
    %v592 = vsub.f32 %v154, %v591
    %v593 = vand.u32 %v592, 4294901760
    %594 = vmatmul.f32.gmra.mxu0 %v593
    %v595 = vpop.f32.mrf.mxu0
    %v596 = vadd.f32 %v486, %v595
    %v597 = vand.u32 %v157, 4294901760
    %v598 = vsub.f32 %v157, %v597
    %v599 = vand.u32 %v598, 4294901760
    %600 = vmatmul.f32.gmra.mxu0 %v599
    %v601 = vpop.f32.mrf.mxu0
    %v602 = vadd.f32 %v491, %v601
    %v603 = vand.u32 %v160, 4294901760
    %v604 = vsub.f32 %v160, %v603
    %v605 = vand.u32 %v604, 4294901760
    %606 = vmatmul.f32.gmra.mxu0 %v605
    %v607 = vpop.f32.mrf.mxu0
    %v608 = vadd.f32 %v496, %v607
    %v609 = vand.u32 %v163, 4294901760
    %v610 = vsub.f32 %v163, %v609
    %v611 = vand.u32 %v610, 4294901760
    %612 = vmatmul.f32.gmra.mxu0 %v611
    %v613 = vpop.f32.mrf.mxu0
    %v614 = vadd.f32 %v501, %v613
    %v615 = vand.u32 %v166, 4294901760
    %v616 = vsub.f32 %v166, %v615
    %v617 = vand.u32 %v616, 4294901760
    %618 = vmatmul.f32.gmra.mxu0 %v617
    %v619 = vpop.f32.mrf.mxu0
    %v620 = vadd.f32 %v506, %v619
    %v621 = vand.u32 %v169, 4294901760
    %v622 = vsub.f32 %v169, %v621
    %v623 = vand.u32 %v622, 4294901760
    %624 = vmatmul.f32.gmra.mxu0 %v623
    %v625 = vpop.f32.mrf.mxu0
    %v626 = vadd.f32 %v511, %v625
    %627 = vdwg.mxu0
    %628 = vmatpush.msra.mxu0 0.0
    %629 = vmatpush.msra.mxu0 0.0
    %630 = vmatpush.msra.mxu0 0.0
    %631 = vmatpush.msra.mxu0 0.0
    %632 = vmatpush.msra.mxu0 0.0
    %633 = vmatpush.msra.mxu0 0.0
    %634 = vmatpush.msra.mxu0 0.0
    %635 = vmatpush.msra.mxu0 0.0
    %636 = vmatpush.msra.mxu0 0.0
    %637 = vmatpush.msra.mxu0 0.0
    %638 = vmatpush.msra.mxu0 0.0
    %639 = vmatpush.msra.mxu0 0.0
    %640 = vmatpush.msra.mxu0 0.0
    %641 = vmatpush.msra.mxu0 0.0
    %v642 = vand.u32 %v172, 4294901760
    %v643 = vsub.f32 %v172, %v642
    %v644 = vand.u32 %v643, 4294901760
    %645 = vmatpush.msra.mxu0 %v644
    %v646 = vand.u32 %v88, 4294901760
    %v647 = vsub.f32 %v88, %v646
    %v648 = vand.u32 %v647, 4294901760
    %649 = vmatpush.msra.mxu0 %v648
    %v650 = vand.u32 %v124, 4294901760
    %651 = vmatmul.f32.gmra.mxu0 %v650
    %v652 = vpop.f32.mrf.mxu0
    %v653 = vadd.f32 %v536, %v652
    %v654 = vand.u32 %v127, 4294901760
    %655 = vmatmul.f32.gmra.mxu0 %v654
    %v656 = vpop.f32.mrf.mxu0
    %v657 = vadd.f32 %v542, %v656
    %v658 = vand.u32 %v130, 4294901760
    %659 = vmatmul.f32.gmra.mxu0 %v658
    %v660 = vpop.f32.mrf.mxu0
    %v661 = vadd.f32 %v548, %v660
    %v662 = vand.u32 %v133, 4294901760
    %663 = vmatmul.f32.gmra.mxu0 %v662
    %v664 = vpop.f32.mrf.mxu0
    %v665 = vadd.f32 %v554, %v664
    %v666 = vand.u32 %v136, 4294901760
    %667 = vmatmul.f32.gmra.mxu0 %v666
    %v668 = vpop.f32.mrf.mxu0
    %v669 = vadd.f32 %v560, %v668
    %v670 = vand.u32 %v139, 4294901760
    %671 = vmatmul.f32.gmra.mxu0 %v670
    %v672 = vpop.f32.mrf.mxu0
    %v673 = vadd.f32 %v566, %v672
    %v674 = vand.u32 %v142, 4294901760
    %675 = vmatmul.f32.gmra.mxu0 %v674
    %v676 = vpop.f32.mrf.mxu0
    %v677 = vadd.f32 %v572, %v676
    %v678 = vand.u32 %v145, 4294901760
    %679 = vmatmul.f32.gmra.mxu0 %v678
    %v680 = vpop.f32.mrf.mxu0
    %v681 = vadd.f32 %v578, %v680
    %v682 = vand.u32 %v148, 4294901760
    %683 = vmatmul.f32.gmra.mxu0 %v682
    %v684 = vpop.f32.mrf.mxu0
    %v685 = vadd.f32 %v584, %v684
    %v686 = vand.u32 %v151, 4294901760
    %687 = vmatmul.f32.gmra.mxu0 %v686
    %v688 = vpop.f32.mrf.mxu0
    %v689 = vadd.f32 %v590, %v688
    %v690 = vand.u32 %v154, 4294901760
    %691 = vmatmul.f32.gmra.mxu0 %v690
    %v692 = vpop.f32.mrf.mxu0
    %v693 = vadd.f32 %v596, %v692
    %v694 = vand.u32 %v157, 4294901760
    %695 = vmatmul.f32.gmra.mxu0 %v694
    %v696 = vpop.f32.mrf.mxu0
    %v697 = vadd.f32 %v602, %v696
    %v698 = vand.u32 %v160, 4294901760
    %699 = vmatmul.f32.gmra.mxu0 %v698
    %v700 = vpop.f32.mrf.mxu0
    %v701 = vadd.f32 %v608, %v700
    %v702 = vand.u32 %v163, 4294901760
    %703 = vmatmul.f32.gmra.mxu0 %v702
    %v704 = vpop.f32.mrf.mxu0
    %v705 = vadd.f32 %v614, %v704
    %v706 = vand.u32 %v166, 4294901760
    %707 = vmatmul.f32.gmra.mxu0 %v706
    %v708 = vpop.f32.mrf.mxu0
    %v709 = vadd.f32 %v620, %v708
    %v710 = vand.u32 %v169, 4294901760
    %711 = vmatmul.f32.gmra.mxu0 %v710
    %v712 = vpop.f32.mrf.mxu0
    %v713 = vadd.f32 %v626, %v712
    %714 = vdwg.mxu0
    %715 = vmatpush.msra.mxu0 0.0
    %716 = vmatpush.msra.mxu0 0.0
    %717 = vmatpush.msra.mxu0 0.0
    %718 = vmatpush.msra.mxu0 0.0
    %719 = vmatpush.msra.mxu0 0.0
    %720 = vmatpush.msra.mxu0 0.0
    %721 = vmatpush.msra.mxu0 0.0
    %722 = vmatpush.msra.mxu0 0.0
    %723 = vmatpush.msra.mxu0 0.0
    %724 = vmatpush.msra.mxu0 0.0
    %725 = vmatpush.msra.mxu0 0.0
    %726 = vmatpush.msra.mxu0 0.0
    %727 = vmatpush.msra.mxu0 0.0
    %728 = vmatpush.msra.mxu0 0.0
    %v729 = vand.u32 %v172, 4294901760
    %730 = vmatpush.msra.mxu0 %v729
    %v731 = vand.u32 %v88, 4294901760
    %732 = vmatpush.msra.mxu0 %v731
    %v733 = vand.u32 %v124, 4294901760
    %734 = vmatmul.f32.gmra.mxu0 %v733
    %v735 = vpop.f32.mrf.mxu0
    %v736 = vadd.f32 %v653, %v735
    %v737 = vand.u32 %v127, 4294901760
    %738 = vmatmul.f32.gmra.mxu0 %v737
    %v739 = vpop.f32.mrf.mxu0
    %v740 = vadd.f32 %v657, %v739
    %v741 = vand.u32 %v130, 4294901760
    %742 = vmatmul.f32.gmra.mxu0 %v741
    %v743 = vpop.f32.mrf.mxu0
    %v744 = vadd.f32 %v661, %v743
    %v745 = vand.u32 %v133, 4294901760
    %746 = vmatmul.f32.gmra.mxu0 %v745
    %v747 = vpop.f32.mrf.mxu0
    %v748 = vadd.f32 %v665, %v747
    %v749 = vand.u32 %v136, 4294901760
    %750 = vmatmul.f32.gmra.mxu0 %v749
    %v751 = vpop.f32.mrf.mxu0
    %v752 = vadd.f32 %v669, %v751
    %v753 = vand.u32 %v139, 4294901760
    %754 = vmatmul.f32.gmra.mxu0 %v753
    %v755 = vpop.f32.mrf.mxu0
    %v756 = vadd.f32 %v673, %v755
    %v757 = vand.u32 %v142, 4294901760
    %758 = vmatmul.f32.gmra.mxu0 %v757
    %v759 = vpop.f32.mrf.mxu0
    %v760 = vadd.f32 %v677, %v759
    %v761 = vand.u32 %v145, 4294901760
    %762 = vmatmul.f32.gmra.mxu0 %v761
    %v763 = vpop.f32.mrf.mxu0
    %v764 = vadd.f32 %v681, %v763
    %v765 = vand.u32 %v148, 4294901760
    %766 = vmatmul.f32.gmra.mxu0 %v765
    %v767 = vpop.f32.mrf.mxu0
    %v768 = vadd.f32 %v685, %v767
    %v769 = vand.u32 %v151, 4294901760
    %770 = vmatmul.f32.gmra.mxu0 %v769
    %v771 = vpop.f32.mrf.mxu0
    %v772 = vadd.f32 %v689, %v771
    %v773 = vand.u32 %v154, 4294901760
    %774 = vmatmul.f32.gmra.mxu0 %v773
    %v775 = vpop.f32.mrf.mxu0
    %v776 = vadd.f32 %v693, %v775
    %v777 = vand.u32 %v157, 4294901760
    %778 = vmatmul.f32.gmra.mxu0 %v777
    %v779 = vpop.f32.mrf.mxu0
    %v780 = vadd.f32 %v697, %v779
    %v781 = vand.u32 %v160, 4294901760
    %782 = vmatmul.f32.gmra.mxu0 %v781
    %v783 = vpop.f32.mrf.mxu0
    %v784 = vadd.f32 %v701, %v783
    %v785 = vand.u32 %v163, 4294901760
    %786 = vmatmul.f32.gmra.mxu0 %v785
    %v787 = vpop.f32.mrf.mxu0
    %v788 = vadd.f32 %v705, %v787
    %v789 = vand.u32 %v166, 4294901760
    %790 = vmatmul.f32.gmra.mxu0 %v789
    %v791 = vpop.f32.mrf.mxu0
    %v792 = vadd.f32 %v709, %v791
    %v793 = vand.u32 %v169, 4294901760
    %794 = vmatmul.f32.gmra.mxu0 %v793
    %v795 = vpop.f32.mrf.mxu0
    %v796 = vadd.f32 %v713, %v795
    %797 = vdwg.mxu0
    %798 = vst.msk [vmem:[#allocation2] sm:$0xff] %vm122, %v736
    %799 = vst.msk [vmem:[#allocation2 + $0x8] sm:$0xff] %vm122, %v740
    %800 = vst.msk [vmem:[#allocation2 + $0x10] sm:$0xff] %vm122, %v744
    %801 = vst.msk [vmem:[#allocation2 + $0x18] sm:$0xff] %vm122, %v748
    %802 = vst.msk [vmem:[#allocation2 + $0x20] sm:$0xff] %vm122, %v752
    %803 = vst.msk [vmem:[#allocation2 + $0x28] sm:$0xff] %vm122, %v756
    %804 = vst.msk [vmem:[#allocation2 + $0x30] sm:$0xff] %vm122, %v760
    %805 = vst.msk [vmem:[#allocation2 + $0x38] sm:$0xff] %vm122, %v764
    %806 = vst.msk [vmem:[#allocation2 + $0x40] sm:$0xff] %vm122, %v768
    %807 = vst.msk [vmem:[#allocation2 + $0x48] sm:$0xff] %vm122, %v772
    %808 = vst.msk [vmem:[#allocation2 + $0x50] sm:$0xff] %vm122, %v776
    %809 = vst.msk [vmem:[#allocation2 + $0x58] sm:$0xff] %vm122, %v780
    %810 = vst.msk [vmem:[#allocation2 + $0x60] sm:$0xff] %vm122, %v784
    %811 = vst.msk [vmem:[#allocation2 + $0x68] sm:$0xff] %vm122, %v788
    %812 = vst.msk [vmem:[#allocation2 + $0x70] sm:$0xff] %vm122, %v792
    %813 = vst.msk [vmem:[#allocation2 + $0x78] sm:$0xff] %vm122, %v796
    // Predicated region
    $region18: #{softmaxnet_forward.1} parent=1 // pred_check
      _
    $region19: #{softmaxnet_forward.1} parent=1 // pred_check_branch
      %815 = sbr.rel (0) target = $region21
    $region20: #{softmaxnet_forward.1} parent=1 // pred_region
      %817 = vsyncadd [#allocation3], 1920
      %s818 = sshll.u32 [#allocation2], 4
      %s819 = int_to_ptr.vmem [resolvable:$true] %s818
      %s820 = sshll.u32 %s4, 4
      %s821 = int_to_ptr.hbm [resolvable:$true] %s820
      %826 = dma.vmem_to_hbm [thread:$0]  %s819, 128, %s821, [#allocation3], 128, 128, 8
    $region21: #{softmaxnet_forward.1} parent=1 // pred_fallthru
      _
    // Predicated region
    $region22: #{softmaxnet_forward.1} parent=1 // pred_check
      _
    $region23: #{softmaxnet_forward.1} parent=1 // pred_check_branch
      %828 = sbr.rel (0) target = $region25
    $region24: #{softmaxnet_forward.1} parent=1 // pred_region
      %830 = dma.done [#allocation3], 2048
    $region25: #{softmaxnet_forward.1} parent=1 // pred_fallthru
      _
    %831 = vsyncpa [#allocation3], 1

</llo_original>
